<compile_context>
chip_gen: v5e
topology: v5e:2x2
jax: 0.10.0
libtpu: 0.0.40
codegen_flags: <defaults>
</compile_context>

<pallas_src>
import functools

import jax
import jax.numpy as jnp
from jax.experimental import pallas as pl
from jax.experimental.pallas import tpu as pltpu

NUM_CLASSES = 3
SMOOTH = 1.0
FOCAL_ALPHA = 1.0
FOCAL_GAMMA = 2.0
LOSS_ALPHA = 0.5          # loss_alpha * focal + (1 - loss_alpha) * dice


def _loss_kernel(pred_ref, tgt_ref, out_ref, *,
                 num_classes, acc_rows, f_alpha, f_gamma, has_pad, sentinel):
    t_step = pl.program_id(2)

    @pl.when(t_step == 0)
    def _():
        out_ref[...] = jnp.zeros_like(out_ref)

    t = tgt_ref[...].astype(jnp.int32)           # (tile_rows, 128)
    tile_rows = t.shape[0]
    k = tile_rows // acc_rows

    def partial(v):
        # (tile_rows, 128) -> (acc_rows, 128) partial sum; pure VPU adds,
        # no cross-lane movement.
        if k == 1:
            return v
        return jnp.sum(v.reshape(k, acc_rows, 128), axis=0)
    # TODO(synk): if profiling shows the VALU slot saturated on v6e/v7x,
    # offload these sublane reductions to the idle MXU (ones @ plane).

    # Dense per-class logit planes (lane-dense, full vreg occupancy).
    xs = [pred_ref[c].astype(jnp.float32) for c in range(num_classes)]

    # Softmax over the class axis as elementwise C-way ops.
    m = xs[0]
    for c in range(1, num_classes):
        m = jnp.maximum(m, xs[c])
    es = [jnp.exp(xs[c] - m) for c in range(num_classes)]
    s = es[0]
    for c in range(1, num_classes):
        s = s + es[c]
    r0 = pl.reciprocal(s, approx=True)           # EUP vrcp (free slot)
    inv_s = r0 * (2.0 - s * r0)                  # one Newton step -> ~f32 acc.
    log_s = jnp.log(s)

    if has_pad:
        valid_f = (t != sentinel).astype(jnp.float32)

    x_t = xs[0]                                  # logit of the target class
    for c in range(num_classes):
        mask_b = (t == c)
        mask_f = mask_b.astype(jnp.float32)
        p_c = es[c] * inv_s                      # softmax prob, class c
        if c > 0:
            x_t = jnp.where(mask_b, xs[c], x_t)
        out_ref[c] += partial(p_c * mask_f)                      # intersection
        if c < num_classes - 1:
            psum_plane = p_c * valid_f if has_pad else p_c
            out_ref[num_classes + c] += partial(psum_plane)      # sum of probs
            out_ref[2 * num_classes - 1 + c] += partial(mask_f)  # sum of 1-hot

    # Focal-loss contribution of this tile (ce identity; no logp planes).
    d = x_t - m
    ce = log_s - d                               # -log_softmax at target
    pt = jnp.exp(d) * inv_s                      # softmax prob at target
    omp = 1.0 - pt
    if f_gamma == 2.0:
        mod = omp * omp
    else:
        # TODO(synk): clip(.,0)**gamma differs negligibly from the unclipped
        # reference at pt ~ 1 for non-integer gamma.
        mod = jnp.maximum(omp, 0.0) ** f_gamma
    focal = f_alpha * mod * ce
    if has_pad:
        focal = focal * valid_f
    out_ref[3 * num_classes - 2] += partial(focal)


def _choose_tiling(rows, max_tile_rows):
    """Return (tile_rows, rows_padded).

    Guarantees tile_rows is a multiple of 8 OR equals rows_padded, and
    rows_padded % tile_rows == 0 (so the (8,128) BlockSpec rule always holds
    and the grid never degenerates into hundreds of tiny steps)."""
    if rows <= max_tile_rows:
        return rows, rows                        # single full-extent tile
    best = 0
    for d in range(128, max_tile_rows + 1, 8):   # decent mult-of-8 divisor
        if rows % d == 0:
            best = d
    if best:
        return best, rows
    tile = max(8, (max_tile_rows // 8) * 8)      # pad rows up instead
    rows_padded = ((rows + tile - 1) // tile) * tile
    return tile, rows_padded


def _pick_parts(n_tiles, max_parts):
    best = 1
    for d in range(1, max_parts + 1):
        if n_tiles % d == 0:
            best = d
    return best


def focal_dice_loss(pred, target, *,
                    focal_alpha=FOCAL_ALPHA, focal_gamma=FOCAL_GAMMA,
                    loss_alpha=LOSS_ALPHA, num_classes=NUM_CLASSES,
                    smooth=SMOOTH, max_tile_rows=512, max_parts=4):
    """pred: (B, C, H, W) float logits; target: (B, H, W) integer labels."""
    B, C, H, W = pred.shape
    assert C == num_classes
    npix = H * W
    rows = (npix + 127) // 128
    tile_rows, rows_padded = _choose_tiling(rows, max_tile_rows)
    pad_pix = rows_padded * 128 - npix
    has_pad = pad_pix > 0
    sentinel = num_classes                        # padded pixels get this class

    # Free reshapes; target keeps its native integer dtype (no extra HBM pass).
    pred_flat = pred.reshape(B, C, npix)
    tgt_flat = target.reshape(B, npix)
    if not jnp.issubdtype(tgt_flat.dtype, jnp.integer):
        tgt_flat = tgt_flat.astype(jnp.int32)
    if has_pad:
        # Only awkward shapes pay this extra pass; padded pixels are masked
        # out in-kernel via the sentinel class.
        pred_flat = jnp.pad(pred_flat, ((0, 0), (0, 0), (0, pad_pix)))
        tgt_flat = jnp.pad(tgt_flat, ((0, 0), (0, pad_pix)),
                           constant_values=sentinel)
    pred_r = pred_flat.reshape(B, C, rows_padded, 128)
    tgt_r = tgt_flat.reshape(B, rows_padded, 128)

    acc_rows = 8 if tile_rows % 8 == 0 else tile_rows
    n_tiles = rows_padded // tile_rows
    n_parts = _pick_parts(n_tiles, max_parts)
    tiles_per_part = n_tiles // n_parts
    n_stats = 3 * num_classes - 1                 # C inter, C-1 psum, C-1 tsum, 1 focal
    # TODO(synk): if B * n_parts == 1 (single image, single tile group) there
    # is no parallel work to shard across v7x's two TensorCores.

    kernel = functools.partial(
        _loss_kernel, num_classes=num_classes, acc_rows=acc_rows,
        f_alpha=float(focal_alpha), f_gamma=float(focal_gamma),
        has_pad=has_pad, sentinel=sentinel)

    stats = pl.pallas_call(
        kernel,
        out_shape=jax.ShapeDtypeStruct(
            (B * n_parts, n_stats, acc_rows, 128), jnp.float32),
        grid_spec=pltpu.PrefetchScalarGridSpec(
            num_scalar_prefetch=0,
            grid=(B, n_parts, tiles_per_part),
            in_specs=[
                pl.BlockSpec((None, C, tile_rows, 128),
                             lambda b, p, t: (b, 0, p * tiles_per_part + t, 0)),
                pl.BlockSpec((None, tile_rows, 128),
                             lambda b, p, t: (b, p * tiles_per_part + t, 0)),
            ],
            # Each (b, p) owns its own lane-dense partial-sum block, so the
            # parallel axes never share an accumulator.
            out_specs=pl.BlockSpec((None, n_stats, acc_rows, 128),
                                   lambda b, p, t: (b * n_parts + p, 0, 0, 0)),
        ),
        compiler_params=pltpu.CompilerParams(
            dimension_semantics=("parallel", "parallel", "arbitrary"),
            # Block + live-temporary footprint is ~8 MiB at tile_rows=512;
            # 32 MiB fits every generation's scoped budget (v7x default) and
            # makes Mosaic fail loudly instead of spilling if that grows.
            vmem_limit_bytes=32 * 1024 * 1024),
    )(pred_r, tgt_r)

    # Tiny final combine in plain JAX (a few hundred floats).
    s = jnp.sum(stats, axis=(0, 2, 3))                       # (n_stats,)
    inter = s[:num_classes]
    psum_head = s[num_classes:2 * num_classes - 1]
    tsum_head = s[2 * num_classes - 1:3 * num_classes - 2]
    focal_sum = s[3 * num_classes - 2]

    n_valid = float(B * H * W)
    psum_last = n_valid - jnp.sum(psum_head)                 # softmax sums to 1
    tsum_last = n_valid - jnp.sum(tsum_head)                 # one-hot sums to 1
    psum = jnp.concatenate([psum_head, psum_last[None]])
    tsum = jnp.concatenate([tsum_head, tsum_last[None]])

    dice = (2.0 * inter + smooth) / (psum + tsum + smooth)
    dice_loss = jnp.mean(1.0 - dice)
    focal_loss = focal_sum / n_valid
    return loss_alpha * focal_loss + (1.0 - loss_alpha) * dice_loss


def _reference_loss(pred, target, *, num_classes=NUM_CLASSES, smooth=SMOOTH,
                    focal_alpha=FOCAL_ALPHA, focal_gamma=FOCAL_GAMMA,
                    loss_alpha=LOSS_ALPHA):
    """Pure-JAX reference mirroring the PyTorch FocalDiceLoss module."""
    logp = jax.nn.log_softmax(pred, axis=1)
    p = jnp.exp(logp)
    onehot = jax.nn.one_hot(target, num_classes, axis=1, dtype=pred.dtype)
    ce = -jnp.sum(onehot * logp, axis=1)
    pt = jnp.exp(-ce)
    focal = jnp.mean(focal_alpha * (1.0 - pt) ** focal_gamma * ce)

    dice_loss = 0.0
    for cls in range(num_classes):
        p_cls = p[:, cls]
        t_cls = (target == cls).astype(pred.dtype)
        inter = jnp.sum(p_cls * t_cls)
        union = jnp.sum(p_cls) + jnp.sum(t_cls)
        dice = (2.0 * inter + smooth) / (union + smooth)
        dice_loss += 1.0 - dice
    dice_loss /= num_classes

    return loss_alpha * focal + (1.0 - loss_alpha) * dice_loss


if __name__ == "__main__":
    key = jax.random.PRNGKey(0)
    k_pred, k_tgt = jax.random.split(key)
    B, C, H, W = 2, NUM_CLASSES, 16, 16    # HW = 256 -> 2 lane-rows per image
    pred = jax.random.normal(k_pred, (B, C, H, W), dtype=jnp.float32)
    target = jax.random.randint(k_tgt, (B, H, W), 0, NUM_CLASSES,
                                dtype=jnp.int32)

    loss = focal_dice_loss(pred, target)
    loss = jax.block_until_ready(loss)

    ref = _reference_loss(pred, target)
    assert jnp.allclose(loss, ref, rtol=1e-5, atol=1e-5), (loss, ref)
    print("KERNEL_OK")
</pallas_src>

<mosaic_0001>
module attributes {stable_mosaic.version = 11 : i64} {
  func.func @_loss_kernel(%arg0: i32, %arg1: i32, %arg2: i32, %arg3: memref<1x3x2x128xf32, #tpu.memory_space<vmem>>, %arg4: memref<1x2x128xi32, #tpu.memory_space<vmem>>, %arg5: memref<1x8x2x128xf32, #tpu.memory_space<vmem>>) attributes {dimension_semantics = [#tpu.dimension_semantics<parallel>, #tpu.dimension_semantics<parallel>, #tpu.dimension_semantics<arbitrary>], iteration_bounds = array<i64: 2, 1, 1>, scalar_prefetch = 0 : i64, scratch_operands = 0 : i64, tpu.core_type = #tpu.core_type<tc>, window_params = [{transform_indices = @transform_0, window_bounds = array<i64: 1, 3, 2, 128>}, {transform_indices = @transform_1, window_bounds = array<i64: 1, 2, 128>}, {transform_indices = @transform_2, window_bounds = array<i64: 1, 8, 2, 128>}]} {
    %c0_i32 = arith.constant 0 : i32
    %0 = arith.cmpi eq, %arg2, %c0_i32 : i32
    %1 = arith.extui %0 : i1 to i32
    %c0_i32_0 = arith.constant 0 : i32
    %2 = arith.cmpi ne, %1, %c0_i32_0 : i32
    scf.if %2 {
      %cst_75 = arith.constant 0.000000e+00 : f32
      %105 = vector.broadcast %cst_75 : f32 to vector<8x2x128xf32>
      %c0_76 = arith.constant 0 : index
      %c0_77 = arith.constant 0 : index
      %c0_78 = arith.constant 0 : index
      %c0_79 = arith.constant 0 : index
      %106 = vector.load %arg5[%c0_76, %c0_77, %c0_78, %c0_79] : memref<1x8x2x128xf32, #tpu.memory_space<vmem>>, vector<1x8x2x128xf32>
      %107 = vector.shape_cast %106 : vector<1x8x2x128xf32> to vector<8x2x128xf32>
      %108 = vector.shape_cast %105 : vector<8x2x128xf32> to vector<1x8x2x128xf32>
      tpu.vector_store %arg5[%c0_76, %c0_77, %c0_78, %c0_79], %108 {strides = array<i32>} : memref<1x8x2x128xf32, #tpu.memory_space<vmem>>, vector<1x8x2x128xf32>,
    } else {
    }
    %c0 = arith.constant 0 : index
    %c0_1 = arith.constant 0 : index
    %c0_2 = arith.constant 0 : index
    %3 = vector.load %arg4[%c0, %c0_1, %c0_2] : memref<1x2x128xi32, #tpu.memory_space<vmem>>, vector<1x2x128xi32>
    %4 = vector.shape_cast %3 : vector<1x2x128xi32> to vector<2x128xi32>
    %c0_3 = arith.constant 0 : index
    %c0_4 = arith.constant 0 : index
    %c0_5 = arith.constant 0 : index
    %c0_6 = arith.constant 0 : index
    %5 = vector.load %arg3[%c0_3, %c0_4, %c0_5, %c0_6] : memref<1x3x2x128xf32, #tpu.memory_space<vmem>>, vector<1x1x2x128xf32>
    %6 = vector.shape_cast %5 : vector<1x1x2x128xf32> to vector<2x128xf32>
    %c0_7 = arith.constant 0 : index
    %c1 = arith.constant 1 : index
    %c0_8 = arith.constant 0 : index
    %c0_9 = arith.constant 0 : index
    %7 = vector.load %arg3[%c0_7, %c1, %c0_8, %c0_9] : memref<1x3x2x128xf32, #tpu.memory_space<vmem>>, vector<1x1x2x128xf32>
    %8 = vector.shape_cast %7 : vector<1x1x2x128xf32> to vector<2x128xf32>
    %c0_10 = arith.constant 0 : index
    %c2 = arith.constant 2 : index
    %c0_11 = arith.constant 0 : index
    %c0_12 = arith.constant 0 : index
    %9 = vector.load %arg3[%c0_10, %c2, %c0_11, %c0_12] : memref<1x3x2x128xf32, #tpu.memory_space<vmem>>, vector<1x1x2x128xf32>
    %10 = vector.shape_cast %9 : vector<1x1x2x128xf32> to vector<2x128xf32>
    %11 = arith.maximumf %6, %8 : vector<2x128xf32>
    %12 = arith.maximumf %11, %10 : vector<2x128xf32>
    %13 = arith.subf %6, %12 : vector<2x128xf32>
    %14 = math.exp %13 : vector<2x128xf32>
    %15 = arith.subf %8, %12 : vector<2x128xf32>
    %16 = math.exp %15 : vector<2x128xf32>
    %17 = arith.subf %10, %12 : vector<2x128xf32>
    %18 = math.exp %17 : vector<2x128xf32>
    %19 = arith.addf %14, %16 : vector<2x128xf32>
    %20 = arith.addf %19, %18 : vector<2x128xf32>
    %21 = tpu.reciprocal %20 {approx = true} : vector<2x128xf32> -> vector<2x128xf32>
    %22 = arith.mulf %20, %21 : vector<2x128xf32>
    %cst = arith.constant 2.000000e+00 : f32
    %23 = vector.broadcast %cst : f32 to vector<2x128xf32>
    %24 = arith.subf %23, %22 : vector<2x128xf32>
    %25 = arith.mulf %21, %24 : vector<2x128xf32>
    %26 = math.log %20 : vector<2x128xf32>
    %c0_i32_13 = arith.constant 0 : i32
    %27 = vector.broadcast %c0_i32_13 : i32 to vector<2x128xi32>
    %28 = arith.cmpi eq, %4, %27 : vector<2x128xi32>
    %29 = arith.extui %28 : vector<2x128xi1> to vector<2x128xi32>
    %30 = arith.sitofp %29 : vector<2x128xi32> to vector<2x128xf32>
    %31 = arith.mulf %14, %25 : vector<2x128xf32>
    %c0_14 = arith.constant 0 : index
    %c0_15 = arith.constant 0 : index
    %c0_16 = arith.constant 0 : index
    %c0_17 = arith.constant 0 : index
    %32 = vector.load %arg5[%c0_14, %c0_15, %c0_16, %c0_17] : memref<1x8x2x128xf32, #tpu.memory_space<vmem>>, vector<1x1x2x128xf32>
    %33 = vector.shape_cast %32 : vector<1x1x2x128xf32> to vector<2x128xf32>
    %34 = arith.mulf %31, %30 : vector<2x128xf32>
    %35 = arith.addf %33, %34 : vector<2x128xf32>
    %c0_18 = arith.constant 0 : index
    %c0_19 = arith.constant 0 : index
    %c0_20 = arith.constant 0 : index
    %c0_21 = arith.constant 0 : index
    %36 = vector.load %arg5[%c0_18, %c0_19, %c0_20, %c0_21] : memref<1x8x2x128xf32, #tpu.memory_space<vmem>>, vector<1x1x2x128xf32>
    %37 = vector.shape_cast %36 : vector<1x1x2x128xf32> to vector<2x128xf32>
    %38 = vector.shape_cast %35 : vector<2x128xf32> to vector<1x1x2x128xf32>
    tpu.vector_store %arg5[%c0_18, %c0_19, %c0_20, %c0_21], %38 {strides = array<i32>} : memref<1x8x2x128xf32, #tpu.memory_space<vmem>>, vector<1x1x2x128xf32>,
    %c0_22 = arith.constant 0 : index
    %c3 = arith.constant 3 : index
    %c0_23 = arith.constant 0 : index
    %c0_24 = arith.constant 0 : index
    %39 = vector.load %arg5[%c0_22, %c3, %c0_23, %c0_24] : memref<1x8x2x128xf32, #tpu.memory_space<vmem>>, vector<1x1x2x128xf32>
    %40 = vector.shape_cast %39 : vector<1x1x2x128xf32> to vector<2x128xf32>
    %41 = arith.addf %40, %31 : vector<2x128xf32>
    %c0_25 = arith.constant 0 : index
    %c3_26 = arith.constant 3 : index
    %c0_27 = arith.constant 0 : index
    %c0_28 = arith.constant 0 : index
    %42 = vector.load %arg5[%c0_25, %c3_26, %c0_27, %c0_28] : memref<1x8x2x128xf32, #tpu.memory_space<vmem>>, vector<1x1x2x128xf32>
    %43 = vector.shape_cast %42 : vector<1x1x2x128xf32> to vector<2x128xf32>
    %44 = vector.shape_cast %41 : vector<2x128xf32> to vector<1x1x2x128xf32>
    tpu.vector_store %arg5[%c0_25, %c3_26, %c0_27, %c0_28], %44 {strides = array<i32>} : memref<1x8x2x128xf32, #tpu.memory_space<vmem>>, vector<1x1x2x128xf32>,
    %c0_29 = arith.constant 0 : index
    %c5 = arith.constant 5 : index
    %c0_30 = arith.constant 0 : index
    %c0_31 = arith.constant 0 : index
    %45 = vector.load %arg5[%c0_29, %c5, %c0_30, %c0_31] : memref<1x8x2x128xf32, #tpu.memory_space<vmem>>, vector<1x1x2x128xf32>
    %46 = vector.shape_cast %45 : vector<1x1x2x128xf32> to vector<2x128xf32>
    %47 = arith.addf %46, %30 : vector<2x128xf32>
    %c0_32 = arith.constant 0 : index
    %c5_33 = arith.constant 5 : index
    %c0_34 = arith.constant 0 : index
    %c0_35 = arith.constant 0 : index
    %48 = vector.load %arg5[%c0_32, %c5_33, %c0_34, %c0_35] : memref<1x8x2x128xf32, #tpu.memory_space<vmem>>, vector<1x1x2x128xf32>
    %49 = vector.shape_cast %48 : vector<1x1x2x128xf32> to vector<2x128xf32>
    %50 = vector.shape_cast %47 : vector<2x128xf32> to vector<1x1x2x128xf32>
    tpu.vector_store %arg5[%c0_32, %c5_33, %c0_34, %c0_35], %50 {strides = array<i32>} : memref<1x8x2x128xf32, #tpu.memory_space<vmem>>, vector<1x1x2x128xf32>,
    %c1_i32 = arith.constant 1 : i32
    %51 = vector.broadcast %c1_i32 : i32 to vector<2x128xi32>
    %52 = arith.cmpi eq, %4, %51 : vector<2x128xi32>
    %53 = arith.extui %52 : vector<2x128xi1> to vector<2x128xi32>
    %54 = arith.sitofp %53 : vector<2x128xi32> to vector<2x128xf32>
    %55 = arith.mulf %16, %25 : vector<2x128xf32>
    %56 = arith.select %52, %8, %6 : vector<2x128xi1>, vector<2x128xf32>
    %c0_36 = arith.constant 0 : index
    %c1_37 = arith.constant 1 : index
    %c0_38 = arith.constant 0 : index
    %c0_39 = arith.constant 0 : index
    %57 = vector.load %arg5[%c0_36, %c1_37, %c0_38, %c0_39] : memref<1x8x2x128xf32, #tpu.memory_space<vmem>>, vector<1x1x2x128xf32>
    %58 = vector.shape_cast %57 : vector<1x1x2x128xf32> to vector<2x128xf32>
    %59 = arith.mulf %55, %54 : vector<2x128xf32>
    %60 = arith.addf %58, %59 : vector<2x128xf32>
    %c0_40 = arith.constant 0 : index
    %c1_41 = arith.constant 1 : index
    %c0_42 = arith.constant 0 : index
    %c0_43 = arith.constant 0 : index
    %61 = vector.load %arg5[%c0_40, %c1_41, %c0_42, %c0_43] : memref<1x8x2x128xf32, #tpu.memory_space<vmem>>, vector<1x1x2x128xf32>
    %62 = vector.shape_cast %61 : vector<1x1x2x128xf32> to vector<2x128xf32>
    %63 = vector.shape_cast %60 : vector<2x128xf32> to vector<1x1x2x128xf32>
    tpu.vector_store %arg5[%c0_40, %c1_41, %c0_42, %c0_43], %63 {strides = array<i32>} : memref<1x8x2x128xf32, #tpu.memory_space<vmem>>, vector<1x1x2x128xf32>,
    %c0_44 = arith.constant 0 : index
    %c4 = arith.constant 4 : index
    %c0_45 = arith.constant 0 : index
    %c0_46 = arith.constant 0 : index
    %64 = vector.load %arg5[%c0_44, %c4, %c0_45, %c0_46] : memref<1x8x2x128xf32, #tpu.memory_space<vmem>>, vector<1x1x2x128xf32>
    %65 = vector.shape_cast %64 : vector<1x1x2x128xf32> to vector<2x128xf32>
    %66 = arith.addf %65, %55 : vector<2x128xf32>
    %c0_47 = arith.constant 0 : index
    %c4_48 = arith.constant 4 : index
    %c0_49 = arith.constant 0 : index
    %c0_50 = arith.constant 0 : index
    %67 = vector.load %arg5[%c0_47, %c4_48, %c0_49, %c0_50] : memref<1x8x2x128xf32, #tpu.memory_space<vmem>>, vector<1x1x2x128xf32>
    %68 = vector.shape_cast %67 : vector<1x1x2x128xf32> to vector<2x128xf32>
    %69 = vector.shape_cast %66 : vector<2x128xf32> to vector<1x1x2x128xf32>
    tpu.vector_store %arg5[%c0_47, %c4_48, %c0_49, %c0_50], %69 {strides = array<i32>} : memref<1x8x2x128xf32, #tpu.memory_space<vmem>>, vector<1x1x2x128xf32>,
    %c0_51 = arith.constant 0 : index
    %c6 = arith.constant 6 : index
    %c0_52 = arith.constant 0 : index
    %c0_53 = arith.constant 0 : index
    %70 = vector.load %arg5[%c0_51, %c6, %c0_52, %c0_53] : memref<1x8x2x128xf32, #tpu.memory_space<vmem>>, vector<1x1x2x128xf32>
    %71 = vector.shape_cast %70 : vector<1x1x2x128xf32> to vector<2x128xf32>
    %72 = arith.addf %71, %54 : vector<2x128xf32>
    %c0_54 = arith.constant 0 : index
    %c6_55 = arith.constant 6 : index
    %c0_56 = arith.constant 0 : index
    %c0_57 = arith.constant 0 : index
    %73 = vector.load %arg5[%c0_54, %c6_55, %c0_56, %c0_57] : memref<1x8x2x128xf32, #tpu.memory_space<vmem>>, vector<1x1x2x128xf32>
    %74 = vector.shape_cast %73 : vector<1x1x2x128xf32> to vector<2x128xf32>
    %75 = vector.shape_cast %72 : vector<2x128xf32> to vector<1x1x2x128xf32>
    tpu.vector_store %arg5[%c0_54, %c6_55, %c0_56, %c0_57], %75 {strides = array<i32>} : memref<1x8x2x128xf32, #tpu.memory_space<vmem>>, vector<1x1x2x128xf32>,
    %c2_i32 = arith.constant 2 : i32
    %76 = vector.broadcast %c2_i32 : i32 to vector<2x128xi32>
    %77 = arith.cmpi eq, %4, %76 : vector<2x128xi32>
    %78 = arith.extui %77 : vector<2x128xi1> to vector<2x128xi32>
    %79 = arith.sitofp %78 : vector<2x128xi32> to vector<2x128xf32>
    %80 = arith.mulf %18, %25 : vector<2x128xf32>
    %81 = arith.select %77, %10, %56 : vector<2x128xi1>, vector<2x128xf32>
    %c0_58 = arith.constant 0 : index
    %c2_59 = arith.constant 2 : index
    %c0_60 = arith.constant 0 : index
    %c0_61 = arith.constant 0 : index
    %82 = vector.load %arg5[%c0_58, %c2_59, %c0_60, %c0_61] : memref<1x8x2x128xf32, #tpu.memory_space<vmem>>, vector<1x1x2x128xf32>
    %83 = vector.shape_cast %82 : vector<1x1x2x128xf32> to vector<2x128xf32>
    %84 = arith.mulf %80, %79 : vector<2x128xf32>
    %85 = arith.addf %83, %84 : vector<2x128xf32>
    %c0_62 = arith.constant 0 : index
    %c2_63 = arith.constant 2 : index
    %c0_64 = arith.constant 0 : index
    %c0_65 = arith.constant 0 : index
    %86 = vector.load %arg5[%c0_62, %c2_63, %c0_64, %c0_65] : memref<1x8x2x128xf32, #tpu.memory_space<vmem>>, vector<1x1x2x128xf32>
    %87 = vector.shape_cast %86 : vector<1x1x2x128xf32> to vector<2x128xf32>
    %88 = vector.shape_cast %85 : vector<2x128xf32> to vector<1x1x2x128xf32>
    tpu.vector_store %arg5[%c0_62, %c2_63, %c0_64, %c0_65], %88 {strides = array<i32>} : memref<1x8x2x128xf32, #tpu.memory_space<vmem>>, vector<1x1x2x128xf32>,
    %89 = arith.subf %81, %12 : vector<2x128xf32>
    %90 = arith.subf %26, %89 : vector<2x128xf32>
    %91 = math.exp %89 : vector<2x128xf32>
    %92 = arith.mulf %91, %25 : vector<2x128xf32>
    %cst_66 = arith.constant 1.000000e+00 : f32
    %93 = vector.broadcast %cst_66 : f32 to vector<2x128xf32>
    %94 = arith.subf %93, %92 : vector<2x128xf32>
    %95 = arith.mulf %94, %94 : vector<2x128xf32>
    %cst_67 = arith.constant 1.000000e+00 : f32
    %96 = vector.broadcast %cst_67 : f32 to vector<2x128xf32>
    %97 = arith.mulf %96, %95 : vector<2x128xf32>
    %98 = arith.mulf %97, %90 : vector<2x128xf32>
    %c0_68 = arith.constant 0 : index
    %c7 = arith.constant 7 : index
    %c0_69 = arith.constant 0 : index
    %c0_70 = arith.constant 0 : index
    %99 = vector.load %arg5[%c0_68, %c7, %c0_69, %c0_70] : memref<1x8x2x128xf32, #tpu.memory_space<vmem>>, vector<1x1x2x128xf32>
    %100 = vector.shape_cast %99 : vector<1x1x2x128xf32> to vector<2x128xf32>
    %101 = arith.addf %100, %98 : vector<2x128xf32>
    %c0_71 = arith.constant 0 : index
    %c7_72 = arith.constant 7 : index
    %c0_73 = arith.constant 0 : index
    %c0_74 = arith.constant 0 : index
    %102 = vector.load %arg5[%c0_71, %c7_72, %c0_73, %c0_74] : memref<1x8x2x128xf32, #tpu.memory_space<vmem>>, vector<1x1x2x128xf32>
    %103 = vector.shape_cast %102 : vector<1x1x2x128xf32> to vector<2x128xf32>
    %104 = vector.shape_cast %101 : vector<2x128xf32> to vector<1x1x2x128xf32>
    tpu.vector_store %arg5[%c0_71, %c7_72, %c0_73, %c0_74], %104 {strides = array<i32>} : memref<1x8x2x128xf32, #tpu.memory_space<vmem>>, vector<1x1x2x128xf32>,
    return
  }
  func.func @transform_0(%arg0: i32, %arg1: i32, %arg2: i32) -> (i32, i32, i32, i32) {
    %c1_i32 = arith.constant 1 : i32
    %0 = arith.muli %arg1, %c1_i32 : i32
    %1 = arith.addi %0, %arg2 : i32
    %c0_i32 = arith.constant 0 : i32
    %c0_i32_0 = arith.constant 0 : i32
    %c0_i32_1 = arith.constant 0 : i32
    return %arg0, %c0_i32, %1, %c0_i32_0 : i32, i32, i32, i32
  }
  func.func @transform_1(%arg0: i32, %arg1: i32, %arg2: i32) -> (i32, i32, i32) {
    %c1_i32 = arith.constant 1 : i32
    %0 = arith.muli %arg1, %c1_i32 : i32
    %1 = arith.addi %0, %arg2 : i32
    %c0_i32 = arith.constant 0 : i32
    %c0_i32_0 = arith.constant 0 : i32
    return %arg0, %1, %c0_i32 : i32, i32, i32
  }
  func.func @transform_2(%arg0: i32, %arg1: i32, %arg2: i32) -> (i32, i32, i32, i32) {
    %c1_i32 = arith.constant 1 : i32
    %0 = arith.muli %arg0, %c1_i32 : i32
    %1 = arith.addi %0, %arg1 : i32
    %c0_i32 = arith.constant 0 : i32
    %c0_i32_0 = arith.constant 0 : i32
    %c0_i32_1 = arith.constant 0 : i32
    %c0_i32_2 = arith.constant 0 : i32
    return %1, %c0_i32, %c0_i32_0, %c0_i32_1 : i32, i32, i32, i32
  }
}

</mosaic_0001>

<llo_original>
// kernel: tpu_custom_call.1
$region0: #{tpu_custom_call.1}
  #allocation0 [shape = 'u32[]', space=smem, size = 0x4, offset = 0x4, fixed_abs, tag = 'smem constant byte address 0x4 - core index']
  #allocation1 [shape = 'u32[72,128]{1,0:T(1,128)}', space=vmem, size = 0x9000, scoped, tag = 'internal scratch']
  %s0 = inlined_call_operand.hbm [shape: f32[2,3,2,128], index: 0, kind: input, shape index: {}]
  %s1 = inlined_call_operand.hbm [shape: s32[2,2,128], index: 1, kind: input, shape index: {}]
  %s2 = inlined_call_operand.hbm [shape: f32[2,8,2,128], index: 2, kind: output, shape index: {}]
  %s3 = sld [smem:[#allocation0]]
  $region53: #{tpu_custom_call.1} parent=0
    _
  %s5 = ssub.s32 1, %s3
  %s6 = scalar_select 0, %s5, %s3
  $region1: #{tpu_custom_call.1} parent=0
    #allocation2 [shape = 'u8[6144]{0}', space=vmem, size = 0x1800, scoped, tag = 'input window, operand 0']
    #allocation3 [shape = 's32[2]{0}', space=sflag, size = 0x8, scoped, tag = 'scoped memory for tpu_custom_call.1']
    #allocation4 [shape = 's32[2]{0}', space=sflag, size = 0x8, scoped, tag = 'scoped memory for tpu_custom_call.1']
    #allocation5 [shape = 'u8[2048]{0}', space=vmem, size = 0x800, scoped, tag = 'input window, operand 1']
    #allocation6 [shape = 's32[2]{0}', space=sflag, size = 0x8, scoped, tag = 'scoped memory for tpu_custom_call.1']
    #allocation7 [shape = 'u8[16384]{0}', space=vmem, size = 0x4000, scoped, tag = 'output window, operand 0']
    %7 = vsyncpa [#allocation3], 0
    %s8 = scalar_lea.sflag [#allocation3], 1
    %9 = vsyncpa %s8, 0
    %10 = vsyncpa [#allocation6], 0
    %s11 = scalar_lea.sflag [#allocation6], 1
    %12 = vsyncpa %s11, 0
    %13 = vsyncpa [#allocation4], 0
    %s14 = scalar_lea.sflag [#allocation4], 1
    %15 = vsyncpa %s14, 0
    loop: start=0, step=1, limit=4
    $region2: #{tpu_custom_call.1} parent=1 // loop_pre_header
      _
    $region3: #{tpu_custom_call.1} parent=1 // loop_header
      %s17 = sphi 0, %s21
      %p18 = scmp.ge.s32.totalorder %s17, 4
      %s24 = sphi 0, %s43
      %s25 = sphi 0, %s39
      %s26 = sphi 0, %s35
      %s27 = sphi 0, %s24
      %s28 = sphi 0, %s25
      %s29 = sphi 0, %s26
      %s30 = sphi 0, %s27
      %s31 = sphi 0, %s28
      %s32 = sphi 0, %s29
      %s50 = sphi 0, %s52
      %s53 = sphi 0, %s50
      %s54 = sphi 0, %s53
      %s70 = sphi 0, %s54
      %s80 = sphi 0, %s82
      %s83 = sphi 0, %s80
      %s84 = sphi 0, %s83
      %s100 = sphi 0, %s84
      %s108 = sphi 0, %s110
      %s111 = sphi 0, %s108
      %s112 = sphi 0, %s111
      %s128 = sphi 0, %s112
    $region4: #{tpu_custom_call.1} parent=1 // loop_header_branch
      %20 = sbr.rel (%p18) target = $region8
    $region5: #{tpu_custom_call.1} parent=1 // loop_body
      %s22 = ssub.s32 %s17, 1
      %s23 = ssub.s32 %s17, 2
      %s33 = sadd.s32 1, %s26
      %p34 = scmp.ge.s32.totalorder %s33, 1
      %s35 = scalar_select %p34, 0, %s33
      %s36 = sadd.s32 1, %s25
      %s37 = scalar_select %p34, %s36, %s25
      %p38 = scmp.ge.s32.totalorder %s37, 1
      %s39 = scalar_select %p38, 0, %s37
      %s40 = sadd.s32 1, %s24
      %s41 = scalar_select %p38, %s40, %s24
      %p42 = scmp.ge.s32.totalorder %s41, 2
      %s43 = scalar_select %p42, 0, %s41
      %s44 = sadd.s32 %s25, %s26
      %s45 = sadd.s32 %s39, %s35
      %s46 = ssub.s32 %s24, %s43
      %s47 = ssub.s32 %s44, %s45
      %s48 = sor.u32 %s46, %s47
      %p49 = scmp.eq.s32.totalorder %s48, 0
      %s51 = sadd.s32 %s50, 1
      %s52 = scalar_select %p49, %s50, %s51
      %p55 = pneg %p49
      %p56 = scmp.eq.s32.totalorder %s17, 1
      %p57 = por %p55, %p56
      %p58 = scmp.ne.s32.totalorder %s50, %s53
      %p59 = scmp.eq.s32.totalorder %s17, 0
      %p60 = por %p58, %p59
      %p61 = scmp.ne.s32.totalorder %s50, %s53
      %p62 = scmp.eq.s32.totalorder %s22, 1
      %p63 = por %p61, %p62
      %p64 = scmp.ne.s32.totalorder %s53, %s54
      %p65 = scmp.eq.s32.totalorder %s22, 0
      %p66 = por %p64, %p65
      %p67 = scmp.ne.s32.totalorder %s53, %s54
      %p68 = scmp.eq.s32.totalorder %s23, 1
      %p69 = por %p67, %p68
      %p71 = scmp.ne.s32.totalorder %s54, %s70
      %p72 = scmp.eq.s32.totalorder %s23, 0
      %p73 = por %p71, %p72
      %s74 = sadd.s32 %s25, %s26
      %s75 = sadd.s32 %s39, %s35
      %s76 = ssub.s32 %s24, %s43
      %s77 = ssub.s32 %s74, %s75
      %s78 = sor.u32 %s76, %s77
      %p79 = scmp.eq.s32.totalorder %s78, 0
      %s81 = sadd.s32 %s80, 1
      %s82 = scalar_select %p79, %s80, %s81
      %p85 = pneg %p79
      %p86 = scmp.eq.s32.totalorder %s17, 1
      %p87 = por %p85, %p86
      %p88 = scmp.ne.s32.totalorder %s80, %s83
      %p89 = scmp.eq.s32.totalorder %s17, 0
      %p90 = por %p88, %p89
      %p91 = scmp.ne.s32.totalorder %s80, %s83
      %p92 = scmp.eq.s32.totalorder %s22, 1
      %p93 = por %p91, %p92
      %p94 = scmp.ne.s32.totalorder %s83, %s84
      %p95 = scmp.eq.s32.totalorder %s22, 0
      %p96 = por %p94, %p95
      %p97 = scmp.ne.s32.totalorder %s83, %s84
      %p98 = scmp.eq.s32.totalorder %s23, 1
      %p99 = por %p97, %p98
      %p101 = scmp.ne.s32.totalorder %s84, %s100
      %p102 = scmp.eq.s32.totalorder %s23, 0
      %p103 = por %p101, %p102
      %s104 = sadd.s32 %s24, %s25
      %s105 = sadd.s32 %s43, %s39
      %s106 = ssub.s32 %s104, %s105
      %p107 = scmp.eq.s32.totalorder %s106, 0
      %s109 = sadd.s32 %s108, 1
      %s110 = scalar_select %p107, %s108, %s109
      %p113 = pneg %p107
      %p114 = scmp.eq.s32.totalorder %s17, 1
      %p115 = por %p113, %p114
      %p116 = scmp.ne.s32.totalorder %s108, %s111
      %p117 = scmp.eq.s32.totalorder %s17, 0
      %p118 = por %p116, %p117
      %p119 = scmp.ne.s32.totalorder %s108, %s111
      %p120 = scmp.eq.s32.totalorder %s22, 1
      %p121 = por %p119, %p120
      %p122 = scmp.ne.s32.totalorder %s111, %s112
      %p123 = scmp.eq.s32.totalorder %s22, 0
      %p124 = por %p122, %p123
      %p125 = scmp.ne.s32.totalorder %s111, %s112
      %p126 = scmp.eq.s32.totalorder %s23, 1
      %p127 = por %p125, %p126
      %p129 = scmp.ne.s32.totalorder %s112, %s128
      %p130 = scmp.eq.s32.totalorder %s23, 0
      %p131 = por %p129, %p130
      %p132 = scmp.le.s32.totalorder 1, %s17
      %p133 = scmp.lt.s32.totalorder %s17, 3
      %p134 = pnand %p132, %p133
      %p135 = pneg %p134
      // Predicated region
      $region9: #{tpu_custom_call.1} parent=5 // pred_check
        _
      $region10: #{tpu_custom_call.1} parent=5 // pred_check_branch
        %137 = sbr.rel (%p134) target = $region12
      $region11: #{tpu_custom_call.1} parent=5 // pred_region
        %s138 = ssub.s32 %s17, 1
      $region12: #{tpu_custom_call.1} parent=5 // pred_fallthru
        _
      %p139 = scmp.lt.s32.totalorder %s17, 2
      // Predicated region
      $region13: #{tpu_custom_call.1} parent=5 // pred_check
        %p140 = pneg %p139
      $region14: #{tpu_custom_call.1} parent=5 // pred_check_branch
        %142 = sbr.rel (%p140) target = $region16
      $region15: #{tpu_custom_call.1} parent=5 // pred_region
        // Predicated region
        $region17: #{tpu_custom_call.1} parent=15 // pred_check
          %p143 = pneg %p60
        $region18: #{tpu_custom_call.1} parent=15 // pred_check_branch
          %145 = sbr.rel (%p143) target = $region20
        $region19: #{tpu_custom_call.1} parent=15 // pred_region
          %s146 = sand.u32 %s50, 1
          %s147 = scalar_lea.sflag [#allocation3], %s146
          %s148 = sand.u32 %s50, 1
          %s149 = smul.addr %s148, 6
          %s150 = scalar_lea.vmem [#allocation2], %s149
          %s151 = sadd.s32 %s25, %s26
          %153 = vsyncadd %s147, 0
          %s154 = smul.addr %s24, 3
          %s155 = sadd.s32 %s151, %s154
          %s156 = smul.addr %s155, 2
          %s157 = scalar_lea.hbm %s0, %s156
          %s158 = sshll.u32 %s157, 4
          %s159 = int_to_ptr.hbm [resolvable:$true] %s158
          %s160 = sshll.u32 %s150, 4
          %s161 = int_to_ptr.vmem [resolvable:$true] %s160
          %166 = dma.hbm_to_vmem [thread:$0]  %s159, 96, %s161, %s147, 32, 32, 2
        $region20: #{tpu_custom_call.1} parent=15 // pred_fallthru
          _
        // Predicated region
        $region21: #{tpu_custom_call.1} parent=15 // pred_check
          %p167 = pneg %p90
        $region22: #{tpu_custom_call.1} parent=15 // pred_check_branch
          %169 = sbr.rel (%p167) target = $region24
        $region23: #{tpu_custom_call.1} parent=15 // pred_region
          %s170 = sand.u32 %s80, 1
          %s171 = scalar_lea.sflag [#allocation6], %s170
          %s172 = sand.u32 %s80, 1
          %s173 = smul.addr %s172, 2
          %s174 = scalar_lea.vmem [#allocation5], %s173
          %s175 = sadd.s32 %s25, %s26
          %177 = vsyncadd %s171, 0
          %s178 = sadd.s32 %s175, %s24
          %s179 = smul.addr %s178, 2
          %s180 = scalar_lea.hbm %s1, %s179
          %s182 = sshll.u32 %s180, 4
          %s183 = int_to_ptr.hbm [resolvable:$true] %s182
          %s184 = sshll.u32 %s174, 4
          %s185 = int_to_ptr.vmem [resolvable:$true] %s184
          %187 = dma.hbm_to_vmem [thread:$0]  %s183, 32, %s185, %s171
        $region24: #{tpu_custom_call.1} parent=15 // pred_fallthru
          _
      $region16: #{tpu_custom_call.1} parent=5 // pred_fallthru
        _
      %p188 = scmp.le.s32.totalorder 1, %s17
      %p189 = scmp.lt.s32.totalorder %s17, 3
      %p190 = pnand %p188, %p189
      %p191 = pneg %p190
      // Predicated region
      $region25: #{tpu_custom_call.1} parent=5 // pred_check
        _
      $region26: #{tpu_custom_call.1} parent=5 // pred_check_branch
        %193 = sbr.rel (%p190) target = $region28
      $region27: #{tpu_custom_call.1} parent=5 // pred_region
        %s194 = ssub.s32 %s17, 1
        %s195 = sand.u32 %s53, 1
        %s196 = scalar_lea.sflag [#allocation3], %s195
        %s197 = sand.u32 %s53, 1
        %s198 = smul.addr %s197, 6
        %s199 = scalar_lea.vmem [#allocation2], %s198
        // Predicated region
        $region29: #{tpu_custom_call.1} parent=27 // pred_check
          %p200 = pneg %p66
        $region30: #{tpu_custom_call.1} parent=27 // pred_check_branch
          %202 = sbr.rel (%p200) target = $region32
        $region31: #{tpu_custom_call.1} parent=27 // pred_region
          %204 = dma.done %s196, 96
        $region32: #{tpu_custom_call.1} parent=27 // pred_fallthru
          _
        %s205 = sand.u32 %s83, 1
        %s206 = scalar_lea.sflag [#allocation6], %s205
        %s207 = sand.u32 %s83, 1
        %s208 = smul.addr %s207, 2
        %s209 = scalar_lea.vmem [#allocation5], %s208
        // Predicated region
        $region33: #{tpu_custom_call.1} parent=27 // pred_check
          %p210 = pneg %p96
        $region34: #{tpu_custom_call.1} parent=27 // pred_check_branch
          %212 = sbr.rel (%p210) target = $region36
        $region35: #{tpu_custom_call.1} parent=27 // pred_region
          %214 = dma.done %s206, 32
        $region36: #{tpu_custom_call.1} parent=27 // pred_fallthru
          _
        %s215 = sand.u32 %s53, 1
        %s216 = scalar_lea.sflag [#allocation3], %s215
        %s217 = sand.u32 %s53, 1
        %s218 = smul.addr %s217, 6
        %s219 = scalar_lea.vmem [#allocation2], %s218
        %p220 = pneg %p66
        %p221 = pneg %p63
        %s222 = sand.u32 %s83, 1
        %s223 = scalar_lea.sflag [#allocation6], %s222
        %s224 = sand.u32 %s83, 1
        %s225 = smul.addr %s224, 2
        %s226 = scalar_lea.vmem [#allocation5], %s225
        %p227 = pneg %p96
        %p228 = pneg %p93
        %p229 = pneg %p124
        %p230 = pneg %p121
        %s231 = sand.u32 %s111, 1
        %s232 = scalar_lea.sflag [#allocation4], %s231
        %s233 = sand.u32 %s111, 1
        %s234 = smul.addr %s233, 16
        %s235 = scalar_lea.vmem [#allocation7], %s234
        %s236 = sadd.s32 %s28, %s29
        %s237 = sadd.s32 %s28, %s29
        %s238 = sadd.s32 %s27, %s28
        %p239 = scmp.eq.s32.totalorder %s29, 0
        // Predicated region
        $region37: #{tpu_custom_call.1} parent=27 // pred_check
          %p240 = pneg %p239
        $region38: #{tpu_custom_call.1} parent=27 // pred_check_branch
          %242 = sbr.rel (%p240) target = $region40
        $region39: #{tpu_custom_call.1} parent=27 // pred_region
          %243 = vst [vmem:[%s235] sm:$0x3] 0.0
          %244 = vst [vmem:[%s235 + $0x2] sm:$0x3] 0.0
          %245 = vst [vmem:[%s235 + $0x4] sm:$0x3] 0.0
          %246 = vst [vmem:[%s235 + $0x6] sm:$0x3] 0.0
          %247 = vst [vmem:[%s235 + $0x8] sm:$0x3] 0.0
          %248 = vst [vmem:[%s235 + $0xa] sm:$0x3] 0.0
          %249 = vst [vmem:[%s235 + $0xc] sm:$0x3] 0.0
          %250 = vst [vmem:[%s235 + $0xe] sm:$0x3] 0.0
        $region40: #{tpu_custom_call.1} parent=27 // pred_fallthru
          _
        %v251 = vld [vmem:[%s209] sm:$0x3]
        %v252 = vld [vmem:[%s199] sm:$0x3]
        %s253 = scalar_lea.vmem %s199, 2 [#allocation2]
        %v254 = vld [vmem:[%s253] sm:$0x3]
        %s255 = scalar_lea.vmem %s199, 4 [#allocation2]
        %v256 = vld [vmem:[%s255] sm:$0x3]
        %v257 = vmax.f32 %v252, %v254
        %v258 = vmax.f32 %v257, %v256
        %v259 = vsub.f32 %v252, %v258
        %v260 = vmul.f32 %v259, 1.442695
        %v261 = vpow.pop %v260
        %v262 = vsub.f32 %v254, %v258
        %v263 = vmul.f32 %v262, 1.442695
        %v264 = vpow.pop %v263
        %v265 = vsub.f32 %v256, %v258
        %v266 = vmul.f32 %v265, 1.442695
        %v267 = vpow.pop %v266
        %v268 = vadd.f32 %v261, %v264
        %v269 = vadd.f32 %v268, %v267
        %v270 = vrcp.pop %v269
        %v271 = vmul.f32 %v269, %v270
        %v272 = vsub.f32 2.0, %v271
        %v273 = vmul.f32 %v270, %v272
        %v274 = vlog2.pop %v269
        %v275 = vmul.f32 %v274, 0.6931472
        %vm276 = vcmp.eq.s32.totalorder %v251, 0
        %v277 = vsel %vm276, 1, 0
        %v278 = vcvt.s32.f32 %v277
        %v279 = vmul.f32 %v261, %v273
        %v280 = vld [vmem:[%s235] sm:$0x3]
        %v281 = vmul.f32 %v279, %v278
        %v282 = vadd.f32 %v280, %v281
        %283 = vst [vmem:[%s235] sm:$0x3] %v282
        %s284 = scalar_lea.vmem %s235, 6 [#allocation7]
        %v285 = vld [vmem:[%s284] sm:$0x3]
        %v286 = vadd.f32 %v285, %v279
        %287 = vst [vmem:[%s284] sm:$0x3] %v286
        %s288 = scalar_lea.vmem %s235, 10 [#allocation7]
        %v289 = vld [vmem:[%s288] sm:$0x3]
        %v290 = vadd.f32 %v289, %v278
        %291 = vst [vmem:[%s288] sm:$0x3] %v290
        %vm292 = vcmp.eq.s32.totalorder %v251, 1
        %v293 = vsel %vm292, 1, 0
        %v294 = vcvt.s32.f32 %v293
        %v295 = vmul.f32 %v264, %v273
        %v296 = vsel %vm292, %v254, %v252
        %s297 = scalar_lea.vmem %s235, 2 [#allocation7]
        %v298 = vld [vmem:[%s297] sm:$0x3]
        %v299 = vmul.f32 %v295, %v294
        %v300 = vadd.f32 %v298, %v299
        %301 = vst [vmem:[%s297] sm:$0x3] %v300
        %s302 = scalar_lea.vmem %s235, 8 [#allocation7]
        %v303 = vld [vmem:[%s302] sm:$0x3]
        %v304 = vadd.f32 %v303, %v295
        %305 = vst [vmem:[%s302] sm:$0x3] %v304
        %s306 = scalar_lea.vmem %s235, 12 [#allocation7]
        %v307 = vld [vmem:[%s306] sm:$0x3]
        %v308 = vadd.f32 %v307, %v294
        %309 = vst [vmem:[%s306] sm:$0x3] %v308
        %vm310 = vcmp.eq.s32.totalorder %v251, 2
        %v311 = vsel %vm310, 1, 0
        %v312 = vcvt.s32.f32 %v311
        %v313 = vmul.f32 %v267, %v273
        %v314 = vsel %vm310, %v256, %v296
        %s315 = scalar_lea.vmem %s235, 4 [#allocation7]
        %v316 = vld [vmem:[%s315] sm:$0x3]
        %v317 = vmul.f32 %v313, %v312
        %v318 = vadd.f32 %v316, %v317
        %319 = vst [vmem:[%s315] sm:$0x3] %v318
        %v320 = vsub.f32 %v314, %v258
        %v321 = vsub.f32 %v275, %v320
        %v322 = vmul.f32 %v320, 1.442695
        %v323 = vpow.pop %v322
        %v324 = vmul.f32 %v323, %v273
        %v325 = vsub.f32 1.0, %v324
        %v326 = vmul.f32 %v325, %v325
        %v327 = vmul.f32 %v326, %v321
        %s328 = scalar_lea.vmem %s235, 14 [#allocation7]
        %v329 = vld [vmem:[%s328] sm:$0x3]
        %v330 = vadd.f32 %v329, %v327
        %331 = vst [vmem:[%s328] sm:$0x3] %v330
        %s332 = sand.u32 %s111, 1
        %s333 = scalar_lea.sflag [#allocation4], %s332
        %s334 = sand.u32 %s111, 1
        %s335 = smul.addr %s334, 16
        %s336 = scalar_lea.vmem [#allocation7], %s335
        // Predicated region
        $region41: #{tpu_custom_call.1} parent=27 // pred_check
          %p337 = pneg %p121
        $region42: #{tpu_custom_call.1} parent=27 // pred_check_branch
          %339 = sbr.rel (%p337) target = $region44
        $region43: #{tpu_custom_call.1} parent=27 // pred_region
          %s340 = sadd.s32 %s27, %s28
          %342 = vsyncadd %s333, 0
          %s343 = smul.addr %s340, 8
          %s344 = smul.addr %s343, 2
          %s345 = scalar_lea.hbm %s2, %s344
          %s346 = sshll.u32 %s336, 4
          %s347 = int_to_ptr.vmem [resolvable:$true] %s346
          %s348 = sshll.u32 %s345, 4
          %s349 = int_to_ptr.hbm [resolvable:$true] %s348
          %354 = dma.vmem_to_hbm [thread:$0]  %s347, 256, %s349, %s333, 32, 32, 2
        $region44: #{tpu_custom_call.1} parent=27 // pred_fallthru
          _
      $region28: #{tpu_custom_call.1} parent=5 // pred_fallthru
        _
      %p355 = scmp.le.s32.totalorder 2, %s17
      // Predicated region
      $region45: #{tpu_custom_call.1} parent=5 // pred_check
        %p356 = pneg %p355
      $region46: #{tpu_custom_call.1} parent=5 // pred_check_branch
        %358 = sbr.rel (%p356) target = $region48
      $region47: #{tpu_custom_call.1} parent=5 // pred_region
        %s359 = ssub.s32 %s17, 2
        // Predicated region
        $region49: #{tpu_custom_call.1} parent=47 // pred_check
          %p360 = pneg %p127
        $region50: #{tpu_custom_call.1} parent=47 // pred_check_branch
          %362 = sbr.rel (%p360) target = $region52
        $region51: #{tpu_custom_call.1} parent=47 // pred_region
          %s363 = sand.u32 %s112, 1
          %s364 = scalar_lea.sflag [#allocation4], %s363
          %s365 = sand.u32 %s112, 1
          %s366 = smul.addr %s365, 16
          %s367 = scalar_lea.vmem [#allocation7], %s366
          %369 = dma.done %s364, 256
        $region52: #{tpu_custom_call.1} parent=47 // pred_fallthru
          _
      $region48: #{tpu_custom_call.1} parent=5 // pred_fallthru
        _
    $region6: #{tpu_custom_call.1} parent=1 // loop_footer
      %s21 = sadd.s32 1, %s17
    $region7: #{tpu_custom_call.1} parent=1 // loop_footer_branch
      %16 = sbr.rel target = $region3
    $region8: #{tpu_custom_call.1} parent=1 // loop_exit
      _
    %370 = vsyncpa [#allocation3], 1
    %s371 = scalar_lea.sflag [#allocation3], 1
    %372 = vsyncpa %s371, 1
    %373 = vsyncpa [#allocation6], 1
    %s374 = scalar_lea.sflag [#allocation6], 1
    %375 = vsyncpa %s374, 1
    %376 = vsyncpa [#allocation4], 1
    %s377 = scalar_lea.sflag [#allocation4], 1
    %378 = vsyncpa %s377, 1

</llo_original>
